<compile_context>
chip_gen: v7x
topology: tpu7x:2x2x1
jax: 0.10.0
libtpu: 0.0.40
codegen_flags: <defaults>
</compile_context>

<pallas_src>
import jax
import jax.numpy as jnp
import numpy as np
from jax.experimental import pallas as pl
from jax.experimental.pallas import tpu as pltpu


def _add_noise_kernel(x_ref, noise_ref, o_ref):
    # x_ref: (B, L), noise_ref: (1, L)  -> broadcast add over the B rows.
    o_ref[...] = x_ref[...] + noise_ref[...]


def dynamic_gnoise(x, seed, *, std=0.05, training=True):
    """Pallas TPU implementation of DynamicGNoise.forward.

    x:    (N, C, S, S), NCHW (same layout as PyTorch).
    seed: int PRNG seed (stands in for torch's global RNG state; pass a fresh
          seed each step to mirror torch's per-call resampling).
    """
    if not training:
        # Eval mode: identity, exactly like the PyTorch module.
        return x

    n, c, h, w = x.shape
    assert h == w, "DynamicGNoise noise buffer is square (shape, shape)"

    rows = n * c
    cols = h * w

    # Sample the single (S, S) noise buffer once (statistically equivalent to
    # torch's normal_(0, std); not bit-identical).
    key = jax.random.PRNGKey(seed)
    noise_hw = (std * jax.random.normal(key, (cols,), dtype=jnp.float32)).astype(
        x.dtype
    )

    # --- Lane-dense folding -------------------------------------------------
    # If S*S is not a multiple of 128, fold G consecutive rows into the lane
    # axis so the output last dim is lane-dense (avoids masked vst.msk partial
    # stores).  The noise row is tiled G times to match.  No-op for S=16.
    g = 1
    if cols % 128 != 0:
        for cand in range(1, rows + 1):
            if rows % cand == 0 and (cand * cols) % 128 == 0:
                g = cand
                break
        # Fallback g == 1: accept masked stores if no divisor of `rows` works.
    frows = rows // g
    fcols = g * cols

    x2d = x.reshape(frows, fcols)
    noise_row = jnp.tile(noise_hw, (g,)).reshape(1, fcols)

    # --- Block-size heuristic -----------------------------------------------
    itemsize = int(x2d.dtype.itemsize)
    # Dtype-aware sublane alignment (sub-32-bit dtypes pack along sublanes).
    sub = 8 if itemsize >= 4 else (16 if itemsize == 2 else 32)

    # Per-block byte budget for the x block.  With the x block AND the output
    # block each double-buffered, live VMEM is ~4x this -> ~8 MiB, which fits
    # every generation's default scoped VMEM (v5e 16 MiB, v6e/v7x 32 MiB)
    # while keeping per-step work large enough to amortize ~0.35 us overhead.
    block_budget = 2 * 1024 * 1024
    bytes_per_row = fcols * itemsize

    col_tiled = (sub * bytes_per_row > block_budget) and (fcols % 128 == 0) and (
        fcols > 128
    )

    if col_tiled:
        # Huge-row case: even `sub` rows exceed the budget -> 2-D (row, col)
        # grid with 128-multiple column chunks.
        bc = ((block_budget // (sub * itemsize)) // 128) * 128
        bc = max(128, min(bc, fcols))
        br = min(sub, frows)
        grid = (pl.cdiv(frows, br), pl.cdiv(fcols, bc))
        in_specs = [
            pl.BlockSpec((br, bc), lambda i, j: (i, j)),   # x tile
            pl.BlockSpec((1, bc), lambda i, j: (0, j)),    # shared noise chunk
        ]
        out_spec = pl.BlockSpec((br, bc), lambda i, j: (i, j))
        dims = ("parallel", "parallel")
    else:
        b = max(1, block_budget // max(1, bytes_per_row))
        if b >= frows:
            # Whole array fits in one block: still split into >= 2 steps so
            # v7x's two TensorCores share the work and the DMA pipeline runs.
            if frows >= 2 * sub:
                b = max(sub, ((frows // 2) // sub) * sub)
            else:
                b = frows
        else:
            b = max(sub, (b // sub) * sub)
        b = min(b, frows)  # full extent is always a legal block
        grid = (pl.cdiv(frows, b),)
        in_specs = [
            pl.BlockSpec((b, fcols), lambda i: (i, 0)),    # x rows block
            pl.BlockSpec((1, fcols), lambda i: (0, 0)),    # shared noise row
        ]
        out_spec = pl.BlockSpec((b, fcols), lambda i: (i, 0))
        dims = ("parallel",)

    out2d = pl.pallas_call(
        _add_noise_kernel,
        out_shape=jax.ShapeDtypeStruct((frows, fcols), x2d.dtype),
        grid=grid,
        in_specs=in_specs,
        out_specs=out_spec,
        compiler_params=pltpu.CompilerParams(
            dimension_semantics=dims,
        ),
    )(x2d, noise_row)

    return out2d.reshape(n, c, h, w)


if __name__ == "__main__":
    key = jax.random.PRNGKey(0)
    N, C, S = 2, 4, 16  # noise buffer is (S, S); x is (N, C, S, S)
    x = jax.random.normal(key, (N, C, S, S), dtype=jnp.float32)

    out = dynamic_gnoise(x, seed=1234, std=0.05, training=True)
    out = jax.block_until_ready(out)

    # Sanity checks of the forward semantics.
    assert out.shape == x.shape and out.dtype == x.dtype

    # Noise must be identical across (n, c) (broadcast of a single (S, S) buffer).
    d = np.asarray(out) - np.asarray(x)
    assert np.allclose(d[0, 0], d[1, 3], atol=1e-5)
    assert np.allclose(d[0, 1], d[1, 0], atol=1e-5)

    # Noise statistics roughly match N(0, 0.05).
    assert abs(float(d[0, 0].mean())) < 0.05
    assert 0.01 < float(d[0, 0].std()) < 0.12

    # Larger case exercising the >=2-step row split and bf16 alignment.
    x_big = jax.random.normal(
        jax.random.PRNGKey(1), (8, 64, S, S), dtype=jnp.bfloat16
    )
    out_big = jax.block_until_ready(
        dynamic_gnoise(x_big, seed=7, std=0.05, training=True)
    )
    d_big = np.asarray(out_big, dtype=np.float32) - np.asarray(
        x_big, dtype=np.float32
    )
    assert np.allclose(d_big[0, 0], d_big[7, 63], atol=1e-2)

    # Eval mode is identity.
    out_eval = jax.block_until_ready(dynamic_gnoise(x, seed=1234, training=False))
    assert np.array_equal(np.asarray(out_eval), np.asarray(x))

    print("KERNEL_OK")
</pallas_src>

<mosaic_0001>
module attributes {stable_mosaic.version = 11 : i64} {
  func.func @_add_noise_kernel(%arg0: i32, %arg1: memref<8x256xf32, #tpu.memory_space<vmem>>, %arg2: memref<1x256xf32, #tpu.memory_space<vmem>>, %arg3: memref<8x256xf32, #tpu.memory_space<vmem>>) attributes {dimension_semantics = [#tpu.dimension_semantics<parallel>], iteration_bounds = array<i64: 1>, scalar_prefetch = 0 : i64, scratch_operands = 0 : i64, tpu.core_type = #tpu.core_type<tc>, window_params = [{transform_indices = @transform_0, window_bounds = array<i64: 8, 256>}, {pipeline_mode = #tpu.pipeline_mode<synchronous>, transform_indices = @transform_1, window_bounds = array<i64: 1, 256>}, {transform_indices = @transform_2, window_bounds = array<i64: 8, 256>}]} {
    %c0 = arith.constant 0 : index
    %c0_0 = arith.constant 0 : index
    %0 = vector.load %arg1[%c0, %c0_0] : memref<8x256xf32, #tpu.memory_space<vmem>>, vector<8x256xf32>
    %c0_1 = arith.constant 0 : index
    %c0_2 = arith.constant 0 : index
    %1 = vector.load %arg2[%c0_1, %c0_2] : memref<1x256xf32, #tpu.memory_space<vmem>>, vector<1x256xf32>
    %2 = vector.broadcast %1 : vector<1x256xf32> to vector<8x256xf32>
    %3 = arith.addf %0, %2 : vector<8x256xf32>
    %c0_3 = arith.constant 0 : index
    %c0_4 = arith.constant 0 : index
    %4 = vector.load %arg3[%c0_3, %c0_4] : memref<8x256xf32, #tpu.memory_space<vmem>>, vector<8x256xf32>
    tpu.vector_store %arg3[%c0_3, %c0_4], %3 {strides = array<i32>} : memref<8x256xf32, #tpu.memory_space<vmem>>, vector<8x256xf32>,
    return
  }
  func.func @transform_0(%arg0: i32) -> (i32, i32) {
    %c0_i32 = arith.constant 0 : i32
    %c0_i32_0 = arith.constant 0 : i32
    return %arg0, %c0_i32 : i32, i32
  }
  func.func @transform_1(%arg0: i32) -> (i32, i32) {
    %c0_i32 = arith.constant 0 : i32
    %c0_i32_0 = arith.constant 0 : i32
    %c0_i32_1 = arith.constant 0 : i32
    return %c0_i32, %c0_i32_0 : i32, i32
  }
  func.func @transform_2(%arg0: i32) -> (i32, i32) {
    %c0_i32 = arith.constant 0 : i32
    %c0_i32_0 = arith.constant 0 : i32
    return %arg0, %c0_i32 : i32, i32
  }
}

</mosaic_0001>

<llo_original>
// kernel: tpu_custom_call.1
$region0: #{tpu_custom_call.1}
  #allocation0 [shape = 'u32[]', space=smem, size = 0x4, offset = 0x4, fixed_abs, tag = 'smem constant byte address 0x4 - core index']
  #allocation1 [shape = 'u32[144,128]{1,0:T(1,128)}', space=vmem, size = 0x12000, scoped, tag = 'internal scratch']
  %s0 = inlined_call_operand.hbm [shape: f32[8,256], index: 0, kind: input, shape index: {}]
  %s1 = inlined_call_operand.vmem [shape: f32[1,256], index: 1, kind: input, shape index: {}]
  %s2 = inlined_call_operand.hbm [shape: f32[8,256], index: 2, kind: output, shape index: {}]
  %s3 = sld [smem:[#allocation0]]
  $region22: #{tpu_custom_call.1} parent=0
    _
  %s5 = ssub.s32 1, %s3
  %s6 = scalar_select 0, %s5, %s3
  $region1: #{tpu_custom_call.1} parent=0
    #allocation2 [shape = 'u8[8192]{0}', space=vmem, size = 0x2000, scoped, tag = 'input window, operand 0, single buffered']
    #allocation3 [shape = 's32[1]{0}', space=sflag, size = 0x4, scoped, tag = 'scoped memory for tpu_custom_call.1']
    #allocation4 [shape = 's32[1]{0}', space=sflag, size = 0x4, scoped, tag = 'scoped memory for tpu_custom_call.1']
    #allocation5 [shape = 'u8[8192]{0}', space=vmem, size = 0x2000, scoped, tag = 'output window, operand 0, single buffered']
    %7 = vsyncpa [#allocation3], 0
    %8 = vsyncpa [#allocation4], 0
    // Predicated region
    $region2: #{tpu_custom_call.1} parent=1 // pred_check
      _
    $region3: #{tpu_custom_call.1} parent=1 // pred_check_branch
      %10 = sbr.rel (0) target = $region5
    $region4: #{tpu_custom_call.1} parent=1 // pred_region
      %s12 = ssub.s32 256, 256
      %13 = vsyncadd [#allocation3], %s12
      %s15 = sshll.u32 [#allocation2], 4
      %s16 = int_to_ptr.vmem [resolvable:$true] %s15
      %18 = dma.hbm_to_vmem [thread:$0]  %s0, 256, %s16, [#allocation3]
    $region5: #{tpu_custom_call.1} parent=1 // pred_fallthru
      _
    // Predicated region
    $region6: #{tpu_custom_call.1} parent=1 // pred_check
      _
    $region7: #{tpu_custom_call.1} parent=1 // pred_check_branch
      %20 = sbr.rel (0) target = $region9
    $region8: #{tpu_custom_call.1} parent=1 // pred_region
      _
    $region9: #{tpu_custom_call.1} parent=1 // pred_fallthru
      _
    // Predicated region
    $region10: #{tpu_custom_call.1} parent=1 // pred_check
      _
    $region11: #{tpu_custom_call.1} parent=1 // pred_check_branch
      %22 = sbr.rel (0) target = $region13
    $region12: #{tpu_custom_call.1} parent=1 // pred_region
      %23 = dma.done [#allocation3], 256
    $region13: #{tpu_custom_call.1} parent=1 // pred_fallthru
      _
    %v24 = vld [vmem:[#allocation2] sm:$0xff]
    %v25 = vld [vmem:[#allocation2 + $0x8] sm:$0xff]
    %v26 = vld [vmem:[%s1] sm:$0x3]
    %v28 = vlaneseq
    %v29 = vshrl.u32 %v28, 7
    %v30 = vsub.s32 0, %v29
    %v31 = vrot.slane %v26, %v30
    %v32 = vlaneseq
    %v33 = vshrl.u32 %v32, 7
    %v34 = vsub.s32 1, %v33
    %v35 = vrot.slane %v26, %v34
    %v38 = vadd.f32 %v24, %v31
    %v39 = vadd.f32 %v25, %v35
    %40 = vst [vmem:[#allocation5] sm:$0xff] %v38
    %41 = vst [vmem:[#allocation5 + $0x8] sm:$0xff] %v39
    // Predicated region
    $region14: #{tpu_custom_call.1} parent=1 // pred_check
      _
    $region15: #{tpu_custom_call.1} parent=1 // pred_check_branch
      %43 = sbr.rel (0) target = $region17
    $region16: #{tpu_custom_call.1} parent=1 // pred_region
      %s45 = ssub.s32 256, 256
      %46 = vsyncadd [#allocation4], %s45
      %s48 = sshll.u32 [#allocation5], 4
      %s49 = int_to_ptr.vmem [resolvable:$true] %s48
      %51 = dma.vmem_to_hbm [thread:$0]  %s49, 256, %s2, [#allocation4]
    $region17: #{tpu_custom_call.1} parent=1 // pred_fallthru
      _
    // Predicated region
    $region18: #{tpu_custom_call.1} parent=1 // pred_check
      _
    $region19: #{tpu_custom_call.1} parent=1 // pred_check_branch
      %53 = sbr.rel (0) target = $region21
    $region20: #{tpu_custom_call.1} parent=1 // pred_region
      %54 = dma.done [#allocation4], 256
    $region21: #{tpu_custom_call.1} parent=1 // pred_fallthru
      _
    %55 = vsyncpa [#allocation3], 1
    %56 = vsyncpa [#allocation4], 1

</llo_original>
